<compile_context>
chip_gen: v7x
topology: tpu7x:2x2x1
jax: 0.10.0
libtpu: 0.0.40
codegen_flags: <defaults>
</compile_context>

<pallas_src>
import numpy as np
import jax
import jax.numpy as jnp
from jax.experimental import pallas as pl
from jax.experimental.pallas import tpu as pltpu

WIN_SIZE = 11
WIN_SIGMA = 1.5
DATA_RANGE = 1.0
K1, K2 = 0.01, 0.03
C1 = (K1 * DATA_RANGE) ** 2
C2 = (K2 * DATA_RANGE) ** 2


def _gauss_win(size=WIN_SIZE, sigma=WIN_SIGMA):
    # Same as pytorch_msssim._fspecial_gauss_1d
    coords = np.arange(size, dtype=np.float64) - size // 2
    g = np.exp(-(coords ** 2) / (2.0 * sigma ** 2))
    g /= g.sum()
    return g.astype(np.float32)


def _gh_mat(H, bh):
    """Block-diagonal (bh*Ho, bh*H): valid Gaussian conv along rows, per
    sublane-stacked image, no cross-image bleed."""
    g = _gauss_win()
    Ho = H - WIN_SIZE + 1
    blk = np.zeros((Ho, H), np.float32)
    for o in range(Ho):
        blk[o, o:o + WIN_SIZE] = g
    out = np.zeros((bh * Ho, bh * H), np.float32)
    for b in range(bh):
        out[b * Ho:(b + 1) * Ho, b * H:(b + 1) * H] = blk
    return out


def _gw_mat(W, nblk):
    """Block-diagonal (nblk*W, nblk*Wo): valid Gaussian conv along columns for
    nblk independent lane chunks (5 channels x bw lane-batched images)."""
    g = _gauss_win()
    Wo = W - WIN_SIZE + 1
    blk = np.zeros((W, Wo), np.float32)
    for j in range(Wo):
        blk[j:j + WIN_SIZE, j] = g
    out = np.zeros((nblk * W, nblk * Wo), np.float32)
    for b in range(nblk):
        out[b * W:(b + 1) * W, b * Wo:(b + 1) * Wo] = blk
    return out


def _pick_tiling(B, H, W):
    """Choose (bh, bw, G): bw images side-by-side along lanes (target ~128
    lanes), bh images stacked along sublanes (target K ~256 for the MXU),
    G = grid steps.  Keep G >= 2 when B >= 2 so both v7x TensorCores get work
    (harmless extra step on single-core v5e/v6e in this overhead-bound regime).
    """
    bt_cap = max(1, -(-B // 2)) if B >= 2 else 1        # ceil(B/2)
    bw = max(1, min(bt_cap, 128 // W)) if W < 128 else 1
    bh = max(1, min(bt_cap // bw, 256 // H)) if H < 256 else 1
    bt = bh * bw
    G = -(-B // bt)
    return bh, bw, G


def _make_kernel(bh, bw, H, W, OUT_W):
    Ho, Wo = H - WIN_SIZE + 1, W - WIN_SIZE + 1
    LW, LWo = bw * W, bw * Wo

    def kernel(x_ref, y_ref, gh_ref, gw_ref, out_ref):
        x = x_ref[0]                    # (bh*H, bw*W) f32
        y = y_ref[0]
        gh = gh_ref[...]                # (bh*Ho, bh*H)  block-diag band
        gw = gw_ref[...]                # (5*bw*W, 5*bw*Wo) block-diag band

        # ----- L1 lane-partial: reduce over sublanes only -----
        l1_part = jnp.sum(jnp.abs(x - y), axis=0, keepdims=True)       # (1, LW)

        # ----- fused separable "valid" Gaussian filter: 2 MXU matmuls -----
        stk = jnp.concatenate([x, y, x * x, y * y, x * y], axis=1)     # (bh*H, 5*LW)
        t = jnp.dot(gh, stk, preferred_element_type=jnp.float32)       # (bh*Ho, 5*LW)
        f = jnp.dot(t, gw, preferred_element_type=jnp.float32)         # (bh*Ho, 5*LWo)

        mu1 = f[:, 0 * LWo:1 * LWo]
        mu2 = f[:, 1 * LWo:2 * LWo]
        exx = f[:, 2 * LWo:3 * LWo]
        eyy = f[:, 3 * LWo:4 * LWo]
        exy = f[:, 4 * LWo:5 * LWo]

        mu1_sq = mu1 * mu1
        mu2_sq = mu2 * mu2
        mu1_mu2 = mu1 * mu2
        s1 = exx - mu1_sq
        s2 = eyy - mu2_sq
        s12 = exy - mu1_mu2

        num = (2.0 * mu1_mu2 + C1) * (2.0 * s12 + C2)
        den = (mu1_sq + mu2_sq + C1) * (s1 + s2 + C2)
        # EUP approximate reciprocal + one Newton-Raphson correction step.
        r = pl.reciprocal(den, approx=True)
        r = r * (2.0 - den * r)
        # Accumulate (ssim - 1): zero-padded batch entries contribute ~0.
        ssim_m1 = num * r - 1.0                                        # (bh*Ho, LWo)

        ssim_part = jnp.sum(ssim_m1, axis=0, keepdims=True)            # (1, LWo)

        # ----- single lane-dense output row: [L1 | SSIM-1 | zero pad] -----
        pieces = [l1_part, ssim_part]
        pad_w = OUT_W - LW - LWo
        if pad_w > 0:
            pieces.append(jnp.zeros((1, pad_w), jnp.float32))
        out_ref[0] = jnp.concatenate(pieces, axis=1)                   # (1, OUT_W)

    return kernel


def combined_loss(pred, target, alpha=0.5):
    """pred, target: (B, 1, H, W) float32 in [0, 1]. Returns (total, l1, ssim_loss)."""
    B, C, H, W = pred.shape
    assert C == 1, "SSIM is configured with channel=1"
    assert H >= WIN_SIZE and W >= WIN_SIZE
    Ho, Wo = H - WIN_SIZE + 1, W - WIN_SIZE + 1

    x = pred.reshape(B, H, W).astype(jnp.float32)
    y = target.reshape(B, H, W).astype(jnp.float32)

    bh, bw, G = _pick_tiling(B, H, W)
    bt = bh * bw
    B_pad = G * bt
    if B_pad != B:
        padw = ((0, B_pad - B), (0, 0), (0, 0))
        x = jnp.pad(x, padw)
        y = jnp.pad(y, padw)

    # Wrapper-side packing: (G, bh, bw, H, W) -> (G, bh*H, bw*W).
    def pack(a):
        a = a.reshape(G, bh, bw, H, W)
        a = a.transpose(0, 1, 3, 2, 4)
        return a.reshape(G, bh * H, bw * W)

    xp, yp = pack(x), pack(y)

    gh = jnp.asarray(_gh_mat(H, bh))                  # (bh*Ho, bh*H)
    gw = jnp.asarray(_gw_mat(W, 5 * bw))              # (5*bw*W, 5*bw*Wo)

    LW, LWo = bw * W, bw * Wo
    OUT_W = 128 * (-(-(LW + LWo) // 128))

    # Generation-aware VMEM cap (v5e/v6e: 128 MiB physical, v7x: 64 MiB).
    try:
        vmem_cap = int(pltpu.get_tpu_info().vmem_capacity_bytes)
    except Exception:
        vmem_cap = 64 * (1 << 20)
    vmem_limit = max(32 * (1 << 20), int(0.8 * vmem_cap))

    kernel = _make_kernel(bh, bw, H, W, OUT_W)

    parts = pl.pallas_call(
        kernel,
        out_shape=jax.ShapeDtypeStruct((G, 1, OUT_W), jnp.float32),
        grid_spec=pltpu.PrefetchScalarGridSpec(
            num_scalar_prefetch=0,
            grid=(G,),
            in_specs=[
                pl.BlockSpec((1, bh * H, bw * W), lambda g: (g, 0, 0)),
                pl.BlockSpec((1, bh * H, bw * W), lambda g: (g, 0, 0)),
                pl.BlockSpec(gh.shape, lambda g: (0, 0)),
                pl.BlockSpec(gw.shape, lambda g: (0, 0)),
            ],
            out_specs=pl.BlockSpec((1, 1, OUT_W), lambda g: (g, 0, 0)),
        ),
        compiler_params=pltpu.CompilerParams(
            dimension_semantics=("parallel",),
            vmem_limit_bytes=vmem_limit),
    )(xp, yp, gh, gw)

    # Final tiny reductions / normalization (plain JAX glue).
    l1_sum = jnp.sum(parts[..., :LW])
    ssim_m1_sum = jnp.sum(parts[..., LW:LW + LWo])
    l1 = l1_sum / (B * C * H * W)
    ssim_loss = -ssim_m1_sum / (B * C * Ho * Wo)      # = 1 - mean(ssim_map)
    total = alpha * l1 + (1.0 - alpha) * ssim_loss
    return total, l1, ssim_loss


if __name__ == "__main__":
    key = jax.random.PRNGKey(0)
    k1, k2 = jax.random.split(key)
    B, C, H, W = 2, 1, 16, 16
    pred = jax.random.uniform(k1, (B, C, H, W), dtype=jnp.float32)
    target = jax.random.uniform(k2, (B, C, H, W), dtype=jnp.float32)

    total, l1, ssim_l = combined_loss(pred, target, alpha=0.5)
    jax.block_until_ready((total, l1, ssim_l))
    print("KERNEL_OK")
</pallas_src>

<mosaic_0001>
module attributes {stable_mosaic.version = 11 : i64} {
  func.func @kernel(%arg0: i32, %arg1: memref<1x16x16xf32, #tpu.memory_space<vmem>>, %arg2: memref<1x16x16xf32, #tpu.memory_space<vmem>>, %arg3: memref<6x16xf32, #tpu.memory_space<vmem>>, %arg4: memref<80x30xf32, #tpu.memory_space<vmem>>, %arg5: memref<1x1x128xf32, #tpu.memory_space<vmem>>) attributes {dimension_semantics = [#tpu.dimension_semantics<parallel>], iteration_bounds = array<i64: 2>, scalar_prefetch = 0 : i64, scratch_operands = 0 : i64, tpu.core_type = #tpu.core_type<tc>, window_params = [{transform_indices = @transform_0, window_bounds = array<i64: 1, 16, 16>}, {transform_indices = @transform_1, window_bounds = array<i64: 1, 16, 16>}, {pipeline_mode = #tpu.pipeline_mode<synchronous>, transform_indices = @transform_2, window_bounds = array<i64: 6, 16>}, {pipeline_mode = #tpu.pipeline_mode<synchronous>, transform_indices = @transform_3, window_bounds = array<i64: 80, 30>}, {transform_indices = @transform_4, window_bounds = array<i64: 1, 1, 128>}]} {
    %c0 = arith.constant 0 : index
    %c0_0 = arith.constant 0 : index
    %c0_1 = arith.constant 0 : index
    %0 = vector.load %arg1[%c0, %c0_0, %c0_1] : memref<1x16x16xf32, #tpu.memory_space<vmem>>, vector<1x16x16xf32>
    %1 = vector.shape_cast %0 : vector<1x16x16xf32> to vector<16x16xf32>
    %c0_2 = arith.constant 0 : index
    %c0_3 = arith.constant 0 : index
    %c0_4 = arith.constant 0 : index
    %2 = vector.load %arg2[%c0_2, %c0_3, %c0_4] : memref<1x16x16xf32, #tpu.memory_space<vmem>>, vector<1x16x16xf32>
    %3 = vector.shape_cast %2 : vector<1x16x16xf32> to vector<16x16xf32>
    %c0_5 = arith.constant 0 : index
    %c0_6 = arith.constant 0 : index
    %4 = vector.load %arg3[%c0_5, %c0_6] : memref<6x16xf32, #tpu.memory_space<vmem>>, vector<6x16xf32>
    %c0_7 = arith.constant 0 : index
    %c0_8 = arith.constant 0 : index
    %5 = vector.load %arg4[%c0_7, %c0_8] : memref<80x30xf32, #tpu.memory_space<vmem>>, vector<80x30xf32>
    %6 = arith.subf %1, %3 : vector<16x16xf32>
    %7 = math.absf %6 : vector<16x16xf32>
    %cst = arith.constant dense<0.000000e+00> : vector<16xf32>
    %8 = vector.multi_reduction <add>, %7, %cst [0] : vector<16x16xf32> to vector<16xf32>
    %9 = vector.shape_cast %8 : vector<16xf32> to vector<1x16xf32>
    %10 = arith.mulf %1, %1 : vector<16x16xf32>
    %11 = arith.mulf %3, %3 : vector<16x16xf32>
    %12 = arith.mulf %1, %3 : vector<16x16xf32>
    %13 = tpu.concatenate %1, %3, %10, %11, %12 in 1 : vector<16x16xf32>, vector<16x16xf32>, vector<16x16xf32>, vector<16x16xf32>, vector<16x16xf32> -> vector<16x80xf32>
    %cst_9 = arith.constant dense<0.000000e+00> : vector<6x80xf32>
    %14 = tpu.matmul %4, %13, %cst_9 {dimension_numbers = #tpu.dot_dimension_numbers<[1], [0], [0], [1], [0, 0, 1, 1], [], []>} : vector<6x16xf32>, vector<16x80xf32>, vector<6x80xf32> -> vector<6x80xf32>
    %cst_10 = arith.constant dense<0.000000e+00> : vector<6x30xf32>
    %15 = tpu.matmul %14, %5, %cst_10 {dimension_numbers = #tpu.dot_dimension_numbers<[1], [0], [0], [1], [0, 0, 1, 1], [], []>} : vector<6x80xf32>, vector<80x30xf32>, vector<6x30xf32> -> vector<6x30xf32>
    %16 = vector.extract_strided_slice %15 {offsets = [0, 0], sizes = [6, 6], strides = [1, 1]} : vector<6x30xf32> to vector<6x6xf32>
    %17 = vector.extract_strided_slice %15 {offsets = [0, 6], sizes = [6, 6], strides = [1, 1]} : vector<6x30xf32> to vector<6x6xf32>
    %18 = vector.extract_strided_slice %15 {offsets = [0, 12], sizes = [6, 6], strides = [1, 1]} : vector<6x30xf32> to vector<6x6xf32>
    %19 = vector.extract_strided_slice %15 {offsets = [0, 18], sizes = [6, 6], strides = [1, 1]} : vector<6x30xf32> to vector<6x6xf32>
    %20 = vector.extract_strided_slice %15 {offsets = [0, 24], sizes = [6, 6], strides = [1, 1]} : vector<6x30xf32> to vector<6x6xf32>
    %21 = arith.mulf %16, %16 : vector<6x6xf32>
    %22 = arith.mulf %17, %17 : vector<6x6xf32>
    %23 = arith.mulf %16, %17 : vector<6x6xf32>
    %24 = arith.subf %18, %21 : vector<6x6xf32>
    %25 = arith.subf %19, %22 : vector<6x6xf32>
    %26 = arith.subf %20, %23 : vector<6x6xf32>
    %cst_11 = arith.constant 2.000000e+00 : f32
    %27 = vector.broadcast %cst_11 : f32 to vector<6x6xf32>
    %28 = arith.mulf %27, %23 : vector<6x6xf32>
    %cst_12 = arith.constant 9.99999974E-5 : f32
    %29 = vector.broadcast %cst_12 : f32 to vector<6x6xf32>
    %30 = arith.addf %28, %29 : vector<6x6xf32>
    %cst_13 = arith.constant 2.000000e+00 : f32
    %31 = vector.broadcast %cst_13 : f32 to vector<6x6xf32>
    %32 = arith.mulf %31, %26 : vector<6x6xf32>
    %cst_14 = arith.constant 8.99999984E-4 : f32
    %33 = vector.broadcast %cst_14 : f32 to vector<6x6xf32>
    %34 = arith.addf %32, %33 : vector<6x6xf32>
    %35 = arith.mulf %30, %34 : vector<6x6xf32>
    %36 = arith.addf %21, %22 : vector<6x6xf32>
    %cst_15 = arith.constant 9.99999974E-5 : f32
    %37 = vector.broadcast %cst_15 : f32 to vector<6x6xf32>
    %38 = arith.addf %36, %37 : vector<6x6xf32>
    %39 = arith.addf %24, %25 : vector<6x6xf32>
    %cst_16 = arith.constant 8.99999984E-4 : f32
    %40 = vector.broadcast %cst_16 : f32 to vector<6x6xf32>
    %41 = arith.addf %39, %40 : vector<6x6xf32>
    %42 = arith.mulf %38, %41 : vector<6x6xf32>
    %43 = tpu.reciprocal %42 {approx = true} : vector<6x6xf32> -> vector<6x6xf32>
    %44 = arith.mulf %42, %43 : vector<6x6xf32>
    %cst_17 = arith.constant 2.000000e+00 : f32
    %45 = vector.broadcast %cst_17 : f32 to vector<6x6xf32>
    %46 = arith.subf %45, %44 : vector<6x6xf32>
    %47 = arith.mulf %43, %46 : vector<6x6xf32>
    %48 = arith.mulf %35, %47 : vector<6x6xf32>
    %cst_18 = arith.constant 1.000000e+00 : f32
    %49 = vector.broadcast %cst_18 : f32 to vector<6x6xf32>
    %50 = arith.subf %48, %49 : vector<6x6xf32>
    %cst_19 = arith.constant dense<0.000000e+00> : vector<6xf32>
    %51 = vector.multi_reduction <add>, %50, %cst_19 [0] : vector<6x6xf32> to vector<6xf32>
    %52 = vector.shape_cast %51 : vector<6xf32> to vector<1x6xf32>
    %cst_20 = arith.constant 0.000000e+00 : f32
    %53 = vector.broadcast %cst_20 : f32 to vector<1x106xf32>
    %54 = tpu.concatenate %9, %52, %53 in 1 : vector<1x16xf32>, vector<1x6xf32>, vector<1x106xf32> -> vector<1x128xf32>
    %c0_21 = arith.constant 0 : index
    %c0_22 = arith.constant 0 : index
    %c0_23 = arith.constant 0 : index
    %55 = vector.load %arg5[%c0_21, %c0_22, %c0_23] : memref<1x1x128xf32, #tpu.memory_space<vmem>>, vector<1x1x128xf32>
    %56 = vector.shape_cast %55 : vector<1x1x128xf32> to vector<1x128xf32>
    %57 = vector.shape_cast %54 : vector<1x128xf32> to vector<1x1x128xf32>
    tpu.vector_store %arg5[%c0_21, %c0_22, %c0_23], %57 {strides = array<i32>} : memref<1x1x128xf32, #tpu.memory_space<vmem>>, vector<1x1x128xf32>,
    return
  }
  func.func @transform_0(%arg0: i32) -> (i32, i32, i32) {
    %c0_i32 = arith.constant 0 : i32
    %c0_i32_0 = arith.constant 0 : i32
    %c0_i32_1 = arith.constant 0 : i32
    return %arg0, %c0_i32, %c0_i32_0 : i32, i32, i32
  }
  func.func @transform_1(%arg0: i32) -> (i32, i32, i32) {
    %c0_i32 = arith.constant 0 : i32
    %c0_i32_0 = arith.constant 0 : i32
    %c0_i32_1 = arith.constant 0 : i32
    return %arg0, %c0_i32, %c0_i32_0 : i32, i32, i32
  }
  func.func @transform_2(%arg0: i32) -> (i32, i32) {
    %c0_i32 = arith.constant 0 : i32
    %c0_i32_0 = arith.constant 0 : i32
    %c0_i32_1 = arith.constant 0 : i32
    return %c0_i32, %c0_i32_0 : i32, i32
  }
  func.func @transform_3(%arg0: i32) -> (i32, i32) {
    %c0_i32 = arith.constant 0 : i32
    %c0_i32_0 = arith.constant 0 : i32
    %c0_i32_1 = arith.constant 0 : i32
    return %c0_i32, %c0_i32_0 : i32, i32
  }
  func.func @transform_4(%arg0: i32) -> (i32, i32, i32) {
    %c0_i32 = arith.constant 0 : i32
    %c0_i32_0 = arith.constant 0 : i32
    %c0_i32_1 = arith.constant 0 : i32
    return %arg0, %c0_i32, %c0_i32_0 : i32, i32, i32
  }
}

</mosaic_0001>

<llo_original>
// kernel: tpu_custom_call.1
$region0: #{tpu_custom_call.1}
  #allocation0 [shape = 'u32[]', space=smem, size = 0x4, offset = 0x4, fixed_abs, tag = 'smem constant byte address 0x4 - core index']
  #allocation1 [shape = 'u32[144,128]{1,0:T(1,128)}', space=vmem, size = 0x12000, scoped, tag = 'internal scratch']
  %s0 = inlined_call_operand.vmem [shape: f32[2,16,16], index: 0, kind: input, shape index: {}]
  %s1 = inlined_call_operand.vmem [shape: f32[2,16,16], index: 1, kind: input, shape index: {}]
  %s2 = inlined_call_operand.vmem [shape: f32[6,16], index: 2, kind: input, shape index: {}]
  %s3 = inlined_call_operand.vmem [shape: f32[80,30], index: 3, kind: input, shape index: {}]
  %s4 = inlined_call_operand.hbm [shape: f32[2,1,128], index: 4, kind: output, shape index: {}]
  %s5 = sld [smem:[#allocation0]]
  $region49: #{tpu_custom_call.1} parent=0
    _
  %s7 = ssub.s32 1, %s5
  %s8 = scalar_select 0, %s7, %s5
  $region1: #{tpu_custom_call.1} parent=0
    #allocation2 [shape = 'u8[1024]{0}', space=vmem, size = 0x400, scoped, tag = 'output window, operand 0']
    #allocation3 [shape = 's32[2]{0}', space=sflag, size = 0x8, scoped, tag = 'scoped memory for tpu_custom_call.1']
    %9 = vsyncpa [#allocation3], 0
    %s10 = scalar_lea.sflag [#allocation3], 1
    %11 = vsyncpa %s10, 0
    loop: start=0, step=1, limit=4
    $region2: #{tpu_custom_call.1} parent=1 // loop_pre_header
      _
    $region3: #{tpu_custom_call.1} parent=1 // loop_header
      %s13 = sphi 0, %s17
      %p14 = scmp.ge.s32.totalorder %s13, 4
      %s23 = sphi 0, %s25
      %s26 = sphi 0, %s23
      %s27 = sphi 0, %s26
      %s43 = sphi 0, %s27
      %s49 = sphi 0, %s51
      %s52 = sphi 0, %s49
      %s53 = sphi 0, %s52
      %s69 = sphi 0, %s53
      %s73 = sphi 0, %s73
      %s75 = sphi 0, %s73
      %s76 = sphi 0, %s75
      %s90 = sphi 0, %s76
      %s94 = sphi 0, %s94
      %s96 = sphi 0, %s94
      %s97 = sphi 0, %s96
      %s111 = sphi 0, %s97
      %s117 = sphi 0, %s119
      %s120 = sphi 0, %s117
      %s121 = sphi 0, %s120
      %s137 = sphi 0, %s121
    $region4: #{tpu_custom_call.1} parent=1 // loop_header_branch
      %16 = sbr.rel (%p14) target = $region8
    $region5: #{tpu_custom_call.1} parent=1 // loop_body
      %s18 = ssub.s32 %s13, 1
      %s19 = ssub.s32 %s13, 2
      %s20 = sadd.s32 %s13, 1
      %s21 = ssub.s32 %s13, %s20
      %p22 = scmp.eq.s32.totalorder %s21, 0
      %s24 = sadd.s32 %s23, 1
      %s25 = scalar_select %p22, %s23, %s24
      %p28 = pneg %p22
      %p29 = scmp.eq.s32.totalorder %s13, 1
      %p30 = por %p28, %p29
      %p31 = scmp.ne.s32.totalorder %s23, %s26
      %p32 = scmp.eq.s32.totalorder %s13, 0
      %p33 = por %p31, %p32
      %p34 = scmp.ne.s32.totalorder %s23, %s26
      %p35 = scmp.eq.s32.totalorder %s18, 1
      %p36 = por %p34, %p35
      %p37 = scmp.ne.s32.totalorder %s26, %s27
      %p38 = scmp.eq.s32.totalorder %s18, 0
      %p39 = por %p37, %p38
      %p40 = scmp.ne.s32.totalorder %s26, %s27
      %p41 = scmp.eq.s32.totalorder %s19, 1
      %p42 = por %p40, %p41
      %p44 = scmp.ne.s32.totalorder %s27, %s43
      %p45 = scmp.eq.s32.totalorder %s19, 0
      %p46 = por %p44, %p45
      %s47 = ssub.s32 %s13, %s20
      %p48 = scmp.eq.s32.totalorder %s47, 0
      %s50 = sadd.s32 %s49, 1
      %s51 = scalar_select %p48, %s49, %s50
      %p54 = pneg %p48
      %p55 = scmp.eq.s32.totalorder %s13, 1
      %p56 = por %p54, %p55
      %p57 = scmp.ne.s32.totalorder %s49, %s52
      %p58 = scmp.eq.s32.totalorder %s13, 0
      %p59 = por %p57, %p58
      %p60 = scmp.ne.s32.totalorder %s49, %s52
      %p61 = scmp.eq.s32.totalorder %s18, 1
      %p62 = por %p60, %p61
      %p63 = scmp.ne.s32.totalorder %s52, %s53
      %p64 = scmp.eq.s32.totalorder %s18, 0
      %p65 = por %p63, %p64
      %p66 = scmp.ne.s32.totalorder %s52, %s53
      %p67 = scmp.eq.s32.totalorder %s19, 1
      %p68 = por %p66, %p67
      %p70 = scmp.ne.s32.totalorder %s53, %s69
      %p71 = scmp.eq.s32.totalorder %s19, 0
      %p72 = por %p70, %p71
      %s74 = sadd.s32 %s73, 1
      %p77 = scmp.eq.s32.totalorder %s13, 1
      %p78 = scmp.ne.s32.totalorder %s73, %s75
      %p79 = scmp.eq.s32.totalorder %s13, 0
      %p80 = por %p78, %p79
      %p81 = scmp.ne.s32.totalorder %s73, %s75
      %p82 = scmp.eq.s32.totalorder %s18, 1
      %p83 = por %p81, %p82
      %p84 = scmp.ne.s32.totalorder %s75, %s76
      %p85 = scmp.eq.s32.totalorder %s18, 0
      %p86 = por %p84, %p85
      %p87 = scmp.ne.s32.totalorder %s75, %s76
      %p88 = scmp.eq.s32.totalorder %s19, 1
      %p89 = por %p87, %p88
      %p91 = scmp.ne.s32.totalorder %s76, %s90
      %p92 = scmp.eq.s32.totalorder %s19, 0
      %p93 = por %p91, %p92
      %s95 = sadd.s32 %s94, 1
      %p98 = scmp.eq.s32.totalorder %s13, 1
      %p99 = scmp.ne.s32.totalorder %s94, %s96
      %p100 = scmp.eq.s32.totalorder %s13, 0
      %p101 = por %p99, %p100
      %p102 = scmp.ne.s32.totalorder %s94, %s96
      %p103 = scmp.eq.s32.totalorder %s18, 1
      %p104 = por %p102, %p103
      %p105 = scmp.ne.s32.totalorder %s96, %s97
      %p106 = scmp.eq.s32.totalorder %s18, 0
      %p107 = por %p105, %p106
      %p108 = scmp.ne.s32.totalorder %s96, %s97
      %p109 = scmp.eq.s32.totalorder %s19, 1
      %p110 = por %p108, %p109
      %p112 = scmp.ne.s32.totalorder %s97, %s111
      %p113 = scmp.eq.s32.totalorder %s19, 0
      %p114 = por %p112, %p113
      %s115 = ssub.s32 %s13, %s20
      %p116 = scmp.eq.s32.totalorder %s115, 0
      %s118 = sadd.s32 %s117, 1
      %s119 = scalar_select %p116, %s117, %s118
      %p122 = pneg %p116
      %p123 = scmp.eq.s32.totalorder %s13, 1
      %p124 = por %p122, %p123
      %p125 = scmp.ne.s32.totalorder %s117, %s120
      %p126 = scmp.eq.s32.totalorder %s13, 0
      %p127 = por %p125, %p126
      %p128 = scmp.ne.s32.totalorder %s117, %s120
      %p129 = scmp.eq.s32.totalorder %s18, 1
      %p130 = por %p128, %p129
      %p131 = scmp.ne.s32.totalorder %s120, %s121
      %p132 = scmp.eq.s32.totalorder %s18, 0
      %p133 = por %p131, %p132
      %p134 = scmp.ne.s32.totalorder %s120, %s121
      %p135 = scmp.eq.s32.totalorder %s19, 1
      %p136 = por %p134, %p135
      %p138 = scmp.ne.s32.totalorder %s121, %s137
      %p139 = scmp.eq.s32.totalorder %s19, 0
      %p140 = por %p138, %p139
      %p141 = scmp.le.s32.totalorder 1, %s13
      %p142 = scmp.lt.s32.totalorder %s13, 3
      %p143 = pnand %p141, %p142
      %p144 = pneg %p143
      // Predicated region
      $region9: #{tpu_custom_call.1} parent=5 // pred_check
        _
      $region10: #{tpu_custom_call.1} parent=5 // pred_check_branch
        %146 = sbr.rel (%p143) target = $region12
      $region11: #{tpu_custom_call.1} parent=5 // pred_region
        %s147 = ssub.s32 %s13, 1
        // Predicated region
        $region13: #{tpu_custom_call.1} parent=11 // pred_check
          %p148 = pneg %p86
        $region14: #{tpu_custom_call.1} parent=11 // pred_check_branch
          %150 = sbr.rel (%p148) target = $region16
        $region15: #{tpu_custom_call.1} parent=11 // pred_region
          _
        $region16: #{tpu_custom_call.1} parent=11 // pred_fallthru
          _
        // Predicated region
        $region17: #{tpu_custom_call.1} parent=11 // pred_check
          %p151 = pneg %p107
        $region18: #{tpu_custom_call.1} parent=11 // pred_check_branch
          %153 = sbr.rel (%p151) target = $region20
        $region19: #{tpu_custom_call.1} parent=11 // pred_region
          _
        $region20: #{tpu_custom_call.1} parent=11 // pred_fallthru
          _
      $region12: #{tpu_custom_call.1} parent=5 // pred_fallthru
        _
      %p154 = scmp.lt.s32.totalorder %s13, 2
      // Predicated region
      $region21: #{tpu_custom_call.1} parent=5 // pred_check
        %p155 = pneg %p154
      $region22: #{tpu_custom_call.1} parent=5 // pred_check_branch
        %157 = sbr.rel (%p155) target = $region24
      $region23: #{tpu_custom_call.1} parent=5 // pred_region
        // Predicated region
        $region25: #{tpu_custom_call.1} parent=23 // pred_check
          %p158 = pneg %p33
        $region26: #{tpu_custom_call.1} parent=23 // pred_check_branch
          %160 = sbr.rel (%p158) target = $region28
        $region27: #{tpu_custom_call.1} parent=23 // pred_region
          %p161 = scmp.lt.s32.totalorder %s13, 1
          %s162 = scalar_select %p161, %s13, 1
          %s163 = smul.addr %s162, 2
          %s164 = smul.addr %s163, 8
          %s165 = scalar_lea.vmem %s0, %s164
        $region28: #{tpu_custom_call.1} parent=23 // pred_fallthru
          _
        // Predicated region
        $region29: #{tpu_custom_call.1} parent=23 // pred_check
          %p166 = pneg %p59
        $region30: #{tpu_custom_call.1} parent=23 // pred_check_branch
          %168 = sbr.rel (%p166) target = $region32
        $region31: #{tpu_custom_call.1} parent=23 // pred_region
          %p169 = scmp.lt.s32.totalorder %s13, 1
          %s170 = scalar_select %p169, %s13, 1
          %s171 = smul.addr %s170, 2
          %s172 = smul.addr %s171, 8
          %s173 = scalar_lea.vmem %s1, %s172
        $region32: #{tpu_custom_call.1} parent=23 // pred_fallthru
          _
      $region24: #{tpu_custom_call.1} parent=5 // pred_fallthru
        _
      %p174 = scmp.le.s32.totalorder 1, %s13
      %p175 = scmp.lt.s32.totalorder %s13, 3
      %p176 = pnand %p174, %p175
      %p177 = pneg %p176
      // Predicated region
      $region33: #{tpu_custom_call.1} parent=5 // pred_check
        _
      $region34: #{tpu_custom_call.1} parent=5 // pred_check_branch
        %179 = sbr.rel (%p176) target = $region36
      $region35: #{tpu_custom_call.1} parent=5 // pred_region
        %s180 = ssub.s32 %s13, 1
        %p181 = scmp.lt.s32.totalorder %s18, 1
        %s182 = scalar_select %p181, %s18, 1
        %s183 = smul.addr %s182, 2
        %s184 = smul.addr %s183, 8
        %s185 = scalar_lea.vmem %s0, %s184
        %p186 = pneg %p39
        %p187 = pneg %p36
        %p188 = scmp.lt.s32.totalorder %s18, 1
        %s189 = scalar_select %p188, %s18, 1
        %s190 = smul.addr %s189, 2
        %s191 = smul.addr %s190, 8
        %s192 = scalar_lea.vmem %s1, %s191
        %p193 = pneg %p65
        %p194 = pneg %p62
        %p195 = pneg %p86
        %p196 = pneg %p83
        %p197 = pneg %p107
        %p198 = pneg %p104
        %p199 = pneg %p133
        %p200 = pneg %p130
        %s201 = sand.u32 %s120, 1
        %s202 = scalar_lea.sflag [#allocation3], %s201
        %s203 = sand.u32 %s120, 1
        %s204 = scalar_lea.vmem [#allocation2], %s203
        %p205 = scmp.lt.s32.totalorder %s18, 1
        %s206 = scalar_select %p205, %s18, 1
        %s207 = smul.addr %s206, 2
        %s208 = smul.addr %s207, 8
        %s209 = scalar_lea.vmem %s0, %s208
        %p210 = scmp.lt.s32.totalorder %s18, 1
        %s211 = scalar_select %p210, %s18, 1
        %s212 = smul.addr %s211, 2
        %s213 = smul.addr %s212, 8
        %s214 = scalar_lea.vmem %s1, %s213
        %v215 = vld [vmem:[%s209] sm:$0xff]
        %v216 = vld [vmem:[%s209 + $0x8] sm:$0xff]
        %v217 = vld [vmem:[%s214] sm:$0xff]
        %v218 = vld [vmem:[%s214 + $0x8] sm:$0xff]
        %v219 = vld [vmem:[%s2] sm:$0x3f]
        %v220 = vld [vmem:[%s3] sm:$0xff]
        %v221 = vld [vmem:[%s3 + $0x8] sm:$0xff]
        %v222 = vld [vmem:[%s3 + $0x10] sm:$0xff]
        %v223 = vld [vmem:[%s3 + $0x18] sm:$0xff]
        %v224 = vld [vmem:[%s3 + $0x20] sm:$0xff]
        %v225 = vld [vmem:[%s3 + $0x28] sm:$0xff]
        %v226 = vld [vmem:[%s3 + $0x30] sm:$0xff]
        %v227 = vld [vmem:[%s3 + $0x38] sm:$0xff]
        %v228 = vld [vmem:[%s3 + $0x40] sm:$0xff]
        %v229 = vld [vmem:[%s3 + $0x48] sm:$0xff]
        %v230 = vsub.f32 %v215, %v217
        %v231 = vsub.f32 %v216, %v218
        %v232 = vand.u32 2147483647, %v230
        %v233 = vand.u32 2147483647, %v231
        %vm234 = vcmask 130048
        %v235 = vsel %vm234, %v232, 0.0
        %v236 = vsel %vm234, %v233, 0.0
        %v237 = vadd.f32 %v235, %v236
        %v238 = vrot.slane %v237, 4
        %v239 = vadd.f32 %v237, %v238
        %v240 = vrot.slane %v239, 2
        %v241 = vadd.f32 %v239, %v240
        %v242 = vrot.slane %v241, 1
        %v243 = vadd.f32 %v241, %v242
        %v244 = vmul.f32 %v215, %v215
        %v245 = vmul.f32 %v216, %v216
        %v246 = vmul.f32 %v217, %v217
        %v247 = vmul.f32 %v218, %v218
        %v248 = vmul.f32 %v215, %v217
        %v249 = vmul.f32 %v216, %v218
        %252 = vrot.lane.b32.xlu0 %v217, 16
        %v253 = vpop.permute.xlu0 %252
        %254 = vrot.lane.b32.xlu0 %v218, 16
        %v255 = vpop.permute.xlu0 %254
        %260 = vrot.lane.b32.xlu0 %v244, 32
        %v261 = vpop.permute.xlu0 %260
        %262 = vrot.lane.b32.xlu0 %v245, 32
        %v263 = vpop.permute.xlu0 %262
        %268 = vrot.lane.b32.xlu0 %v246, 48
        %v269 = vpop.permute.xlu0 %268
        %270 = vrot.lane.b32.xlu0 %v247, 48
        %v271 = vpop.permute.xlu0 %270
        %276 = vrot.lane.b32.xlu0 %v248, 64
        %v277 = vpop.permute.xlu0 %276
        %278 = vrot.lane.b32.xlu0 %v249, 64
        %v279 = vpop.permute.xlu0 %278
        %v282 = vsel %vm234, %v215, %v253
        %v283 = vsel %vm234, %v216, %v255
        %vm284 = vcmask 261120
        %v285 = vsel %vm284, %v282, %v261
        %v286 = vsel %vm284, %v283, %v263
        %vm287 = vcmask 392192
        %v288 = vsel %vm287, %v285, %v269
        %v289 = vsel %vm287, %v286, %v271
        %vm290 = vcmask 523264
        %v291 = vsel %vm290, %v288, %v277
        %v292 = vsel %vm290, %v289, %v279
        %v294 = vsel %vm234, %v219, 0
        %296 = vmatprep.subr.mxu0 0.0
        %297 = vmatpush1.msra.mxu0 %v291
        %298 = vmatprep.subr.mxu0 0.0
        %299 = vmatpush1.msra.mxu0 %v292
        %300 = vmatprep.subr.mxu0 0.0
        %301 = vmatpush1.msra.mxu0 0.0
        %302 = vmatprep.subr.mxu0 0.0
        %303 = vmatpush1.msra.mxu0 0.0
        %304 = vmatprep.subr.mxu0 0.0
        %305 = vmatpush1.msra.mxu0 0.0
        %306 = vmatprep.subr.mxu0 0.0
        %307 = vmatpush1.msra.mxu0 0.0
        %308 = vmatprep.subr.mxu0 0.0
        %309 = vmatpush1.msra.mxu0 0.0
        %310 = vmatprep.subr.mxu0 0.0
        %311 = vmatpush1.msra.mxu0 0.0
        %312 = vmatprep.subr.mxu0 0.0
        %313 = vmatpush1.msra.mxu0 0.0
        %314 = vmatprep.subr.mxu0 0.0
        %315 = vmatpush1.msra.mxu0 0.0
        %316 = vmatprep.subr.mxu0 0.0
        %317 = vmatpush1.msra.mxu0 0.0
        %318 = vmatprep.subr.mxu0 0.0
        %319 = vmatpush1.msra.mxu0 0.0
        %320 = vmatprep.subr.mxu0 0.0
        %321 = vmatpush1.msra.mxu0 0.0
        %322 = vmatprep.subr.mxu0 0.0
        %323 = vmatpush1.msra.mxu0 0.0
        %324 = vmatprep.subr.mxu0 0.0
        %325 = vmatpush1.msra.mxu0 0.0
        %326 = vmatprep.subr.mxu0 0.0
        %327 = vmatpush1.msra.mxu0 0.0
        %328 = vmatprep.subr.mxu0 0.0
        %329 = vmatpush1.msra.mxu0 0.0
        %330 = vmatprep.subr.mxu0 0.0
        %331 = vmatpush1.msra.mxu0 0.0
        %332 = vmatprep.subr.mxu0 0.0
        %333 = vmatpush1.msra.mxu0 0.0
        %334 = vmatprep.subr.mxu0 0.0
        %335 = vmatpush1.msra.mxu0 0.0
        %336 = vmatprep.subr.mxu0 0.0
        %337 = vmatpush1.msra.mxu0 0.0
        %338 = vmatprep.subr.mxu0 0.0
        %339 = vmatpush1.msra.mxu0 0.0
        %340 = vmatprep.subr.mxu0 0.0
        %341 = vmatpush1.msra.mxu0 0.0
        %342 = vmatprep.subr.mxu0 0.0
        %343 = vmatpush1.msra.mxu0 0.0
        %344 = vmatprep.subr.mxu0 0.0
        %345 = vmatpush1.msra.mxu0 0.0
        %346 = vmatprep.subr.mxu0 0.0
        %347 = vmatpush1.msra.mxu0 0.0
        %348 = vmatprep.subr.mxu0 0.0
        %349 = vmatpush1.msra.mxu0 0.0
        %350 = vmatprep.subr.mxu0 0.0
        %351 = vmatpush1.msra.mxu0 0.0
        %352 = vmatprep.subr.mxu0 0.0
        %353 = vmatpush1.msra.mxu0 0.0
        %354 = vmatprep.subr.mxu0 0.0
        %355 = vmatpush1.msra.mxu0 0.0
        %356 = vmatprep.subr.mxu0 0.0
        %357 = vmatpush1.msra.mxu0 0.0
        %358 = vmatprep.subr.mxu0 0.0
        %359 = vmatpush1.msra.mxu0 0.0
        %360 = vmatprep.mubr.f32.mxu0 0.0
        %361 = vmatmul.mubr.f32.gmra.mrb[0].mxu0 %v294
        %v362 = vpop.f32.mrb[0].mxu0
        %v363 = vadd.f32 0.0, %v362
        %v364 = vpop.f32.mrb[0].mxu0
        %365 = vdwg.mxu0
        %vm366 = vcmask 654336
        %v368 = vsel %vm366, %v363, 0
        %370 = vmatprep.subr.mxu0 0.0
        %371 = vmatpush1.msra.mxu0 %v220
        %372 = vmatprep.subr.mxu0 0.0
        %373 = vmatpush1.msra.mxu0 %v221
        %374 = vmatprep.subr.mxu0 0.0
        %375 = vmatpush1.msra.mxu0 %v222
        %376 = vmatprep.subr.mxu0 0.0
        %377 = vmatpush1.msra.mxu0 %v223
        %378 = vmatprep.subr.mxu0 0.0
        %379 = vmatpush1.msra.mxu0 %v224
        %380 = vmatprep.subr.mxu0 0.0
        %381 = vmatpush1.msra.mxu0 %v225
        %382 = vmatprep.subr.mxu0 0.0
        %383 = vmatpush1.msra.mxu0 %v226
        %384 = vmatprep.subr.mxu0 0.0
        %385 = vmatpush1.msra.mxu0 %v227
        %386 = vmatprep.subr.mxu0 0.0
        %387 = vmatpush1.msra.mxu0 %v228
        %388 = vmatprep.subr.mxu0 0.0
        %389 = vmatpush1.msra.mxu0 %v229
        %390 = vmatprep.subr.mxu0 0.0
        %391 = vmatpush1.msra.mxu0 0.0
        %392 = vmatprep.subr.mxu0 0.0
        %393 = vmatpush1.msra.mxu0 0.0
        %394 = vmatprep.subr.mxu0 0.0
        %395 = vmatpush1.msra.mxu0 0.0
        %396 = vmatprep.subr.mxu0 0.0
        %397 = vmatpush1.msra.mxu0 0.0
        %398 = vmatprep.subr.mxu0 0.0
        %399 = vmatpush1.msra.mxu0 0.0
        %400 = vmatprep.subr.mxu0 0.0
        %401 = vmatpush1.msra.mxu0 0.0
        %402 = vmatprep.subr.mxu0 0.0
        %403 = vmatpush1.msra.mxu0 0.0
        %404 = vmatprep.subr.mxu0 0.0
        %405 = vmatpush1.msra.mxu0 0.0
        %406 = vmatprep.subr.mxu0 0.0
        %407 = vmatpush1.msra.mxu0 0.0
        %408 = vmatprep.subr.mxu0 0.0
        %409 = vmatpush1.msra.mxu0 0.0
        %410 = vmatprep.subr.mxu0 0.0
        %411 = vmatpush1.msra.mxu0 0.0
        %412 = vmatprep.subr.mxu0 0.0
        %413 = vmatpush1.msra.mxu0 0.0
        %414 = vmatprep.subr.mxu0 0.0
        %415 = vmatpush1.msra.mxu0 0.0
        %416 = vmatprep.subr.mxu0 0.0
        %417 = vmatpush1.msra.mxu0 0.0
        %418 = vmatprep.subr.mxu0 0.0
        %419 = vmatpush1.msra.mxu0 0.0
        %420 = vmatprep.subr.mxu0 0.0
        %421 = vmatpush1.msra.mxu0 0.0
        %422 = vmatprep.subr.mxu0 0.0
        %423 = vmatpush1.msra.mxu0 0.0
        %424 = vmatprep.subr.mxu0 0.0
        %425 = vmatpush1.msra.mxu0 0.0
        %426 = vmatprep.subr.mxu0 0.0
        %427 = vmatpush1.msra.mxu0 0.0
        %428 = vmatprep.subr.mxu0 0.0
        %429 = vmatpush1.msra.mxu0 0.0
        %430 = vmatprep.subr.mxu0 0.0
        %431 = vmatpush1.msra.mxu0 0.0
        %432 = vmatprep.subr.mxu0 0.0
        %433 = vmatpush1.msra.mxu0 0.0
        %434 = vmatprep.mubr.f32.mxu0 0.0
        %435 = vmatmul.mubr.f32.gmra.mrb[0].mxu0 %v368
        %v436 = vpop.f32.mrb[0].mxu0
        %v437 = vadd.f32 0.0, %v436
        %v438 = vpop.f32.mrb[0].mxu0
        %439 = vdwg.mxu0
        %v440 = vmul.f32 %v437, %v437
        %442 = vrot.lane.b32.xlu0 %v437, 122
        %v443 = vpop.permute.xlu0 %442
        %v445 = vmul.f32 %v437, %v443
        %447 = vrot.lane.b32.xlu0 %v440, 12
        %v448 = vpop.permute.xlu0 %447
        %v450 = vsub.f32 %v437, %v448
        %452 = vrot.lane.b32.xlu0 %v445, 24
        %v453 = vpop.permute.xlu0 %452
        %v455 = vsub.f32 %v437, %v453
        %v456 = vmul.f32 %v445, 2.0
        %v457 = vadd.f32 %v456, 0.0001
        %v458 = vmul.f32 %v455, 2.0
        %v459 = vadd.f32 %v458, 0.0009
        %461 = vrot.lane.b32.xlu0 %v459, 104
        %v462 = vpop.permute.xlu0 %461
        %v464 = vmul.f32 %v457, %v462
        %465 = vrot.lane.b32.xlu0 %v440, 122
        %v466 = vpop.permute.xlu0 %465
        %v468 = vadd.f32 %v440, %v466
        %v469 = vadd.f32 %v468, 0.0001
        %471 = vrot.lane.b32.xlu0 %v450, 122
        %v472 = vpop.permute.xlu0 %471
        %v474 = vadd.f32 %v450, %v472
        %v475 = vadd.f32 %v474, 0.0009
        %477 = vrot.lane.b32.xlu0 %v475, 116
        %v478 = vpop.permute.xlu0 %477
        %v480 = vmul.f32 %v469, %v478
        %v481 = vrcp.pop %v480
        %v482 = vmul.f32 %v480, %v481
        %v483 = vsub.f32 2.0, %v482
        %v484 = vmul.f32 %v481, %v483
        %v485 = vmul.f32 %v464, %v484
        %v486 = vsub.f32 %v485, 1.0
        %vm487 = vcmask 46080
        %v488 = vsel %vm487, %v486, 0.0
        %v489 = vrot.slane %v488, 4
        %v490 = vadd.f32 %v488, %v489
        %v491 = vrot.slane %v490, 2
        %v492 = vadd.f32 %v490, %v491
        %v493 = vrot.slane %v492, 1
        %v494 = vadd.f32 %v492, %v493
        %496 = vrot.lane.b32.xlu0 %v494, 16
        %v497 = vpop.permute.xlu0 %496
        %v499 = vsel %vm234, %v243, %v497
        %vm500 = vcmask 179200
        %v501 = vsel %vm500, %v499, 0.0
        %502 = vst [vmem:[%s204] sm:$0x1] %v501
        %s503 = sand.u32 %s120, 1
        %s504 = scalar_lea.sflag [#allocation3], %s503
        %s505 = sand.u32 %s120, 1
        %s506 = scalar_lea.vmem [#allocation2], %s505
        // Predicated region
        $region37: #{tpu_custom_call.1} parent=35 // pred_check
          %p507 = pneg %p130
        $region38: #{tpu_custom_call.1} parent=35 // pred_check_branch
          %509 = sbr.rel (%p507) target = $region40
        $region39: #{tpu_custom_call.1} parent=35 // pred_region
          %s511 = ssub.s32 16, 16
          %512 = vsyncadd %s504, %s511
          %s513 = smul.addr %s18, 16
          %s514 = scalar_lea.hbm %s4, %s513
          %s516 = sshll.u32 %s506, 4
          %s517 = int_to_ptr.vmem [resolvable:$true] %s516
          %519 = dma.vmem_to_hbm [thread:$0]  %s517, 16, %s514, %s504
        $region40: #{tpu_custom_call.1} parent=35 // pred_fallthru
          _
      $region36: #{tpu_custom_call.1} parent=5 // pred_fallthru
        _
      %p520 = scmp.le.s32.totalorder 2, %s13
      // Predicated region
      $region41: #{tpu_custom_call.1} parent=5 // pred_check
        %p521 = pneg %p520
      $region42: #{tpu_custom_call.1} parent=5 // pred_check_branch
        %523 = sbr.rel (%p521) target = $region44
      $region43: #{tpu_custom_call.1} parent=5 // pred_region
        %s524 = ssub.s32 %s13, 2
        // Predicated region
        $region45: #{tpu_custom_call.1} parent=43 // pred_check
          %p525 = pneg %p136
        $region46: #{tpu_custom_call.1} parent=43 // pred_check_branch
          %527 = sbr.rel (%p525) target = $region48
        $region47: #{tpu_custom_call.1} parent=43 // pred_region
          %s528 = sand.u32 %s121, 1
          %s529 = scalar_lea.sflag [#allocation3], %s528
          %s530 = sand.u32 %s121, 1
          %s531 = scalar_lea.vmem [#allocation2], %s530
          %532 = dma.done %s529, 16
        $region48: #{tpu_custom_call.1} parent=43 // pred_fallthru
          _
      $region44: #{tpu_custom_call.1} parent=5 // pred_fallthru
        _
    $region6: #{tpu_custom_call.1} parent=1 // loop_footer
      %s17 = sadd.s32 1, %s13
    $region7: #{tpu_custom_call.1} parent=1 // loop_footer_branch
      %12 = sbr.rel target = $region3
    $region8: #{tpu_custom_call.1} parent=1 // loop_exit
      _
    %533 = vsyncpa [#allocation3], 1
    %s534 = scalar_lea.sflag [#allocation3], 1
    %535 = vsyncpa %s534, 1

</llo_original>
